<compile_context>
chip_gen: v7x
topology: tpu7x:2x2x1
jax: 0.10.0
libtpu: 0.0.40
codegen_flags: <defaults>
</compile_context>

<pallas_src>
import jax
import jax.numpy as jnp
from jax.experimental import pallas as pl
from jax.experimental.pallas import tpu as pltpu


def _round_up(n, m):
    return (n + m - 1) // m * m


def _sublane(dtype):
    # min sublane multiple per element size (f32: 8, bf16: 16, int8/fp8: 32)
    return {1: 32, 2: 16, 4: 8}.get(jnp.dtype(dtype).itemsize, 8)


def _device_vmem_bytes():
    try:
        return int(pltpu.get_tpu_info().vmem_capacity_bytes)
    except Exception:
        return 64 * 1024 * 1024          # conservative fallback (v7x per-TC VMEM)


def _spec(shape, index_map, single_buffer=False):
    """BlockSpec; single-buffer constant-index (resident) operands."""
    if single_buffer:
        try:
            return pl.BlockSpec(shape, index_map, pipeline_mode=pl.Buffered(1))
        except TypeError:                 # older jax without pipeline_mode kwarg
            pass
    return pl.BlockSpec(shape, index_map)


# --------------------------------------------------------------------------- #
# Kernel
# --------------------------------------------------------------------------- #
def grn_kernel(x_ref, w13_ref, b13_ref, w2_ref, b2_ref, w4_ref, b4_ref,
               o_ref, acc1_ref, acc2_ref):
    h = pl.program_id(1)                          # hidden (reduction) axis

    @pl.when(h == 0)
    def _init():
        acc1_ref[...] = jnp.zeros_like(acc1_ref)
        acc2_ref[...] = jnp.zeros_like(acc2_ref)

    th = w2_ref.shape[0]                          # hidden-tile size (multiple of 128)
    x = x_ref[...]                                # native dtype; f32 accumulation below

    # Stage 1 for this H tile: one wide-N MXU dot against packed [w1_t | w3_t].
    s = jnp.dot(x, w13_ref[...], preferred_element_type=jnp.float32)
    s = jnp.maximum(s + b13_ref[...], 0.0).astype(w2_ref.dtype)   # cast once, then slice

    # Stage 2: accumulate both branches over the hidden reduction axis.
    acc1_ref[...] += jnp.dot(s[:, :th], w2_ref[...], preferred_element_type=jnp.float32)
    acc2_ref[...] += jnp.dot(s[:, th:], w4_ref[...], preferred_element_type=jnp.float32)

    @pl.when(h == pl.num_programs(1) - 1)
    def _finalize():
        x1 = acc1_ref[...] + b2_ref[...]
        z = acc2_ref[...] + b4_ref[...]
        gate = 0.5 * jnp.tanh(0.5 * z) + 0.5      # exact sigmoid, single EUP op
        o_ref[...] = (x1 * gate).astype(o_ref.dtype)


# --------------------------------------------------------------------------- #
# One-time parameter prepacking (hoisted out of the forward call)
# --------------------------------------------------------------------------- #
def prepack_grn_params(params, *, dtype=None, tile_h=None,
                       weight_budget_bytes=24 * 1024 * 1024):
    """Pack/pad the four Linear layers once.

    Weights are stored [in, out] (transpose of torch's [out, in]).  fc1/fc3 are
    interleaved per hidden tile as [... | w1_t | w3_t | ...] so each grid step's
    first stage is a single wide-N MXU matmul, even when H is streamed.
    """
    w1, w2, w3, w4 = params["w1"], params["w2"], params["w3"], params["w4"]
    b1, b2, b3, b4 = params["b1"], params["b2"], params["b3"], params["b4"]
    D_in, H = w1.shape
    D_out = w2.shape[1]
    wdt = jnp.dtype(dtype) if dtype is not None else jnp.dtype(w1.dtype)

    Do_pad = _round_up(D_out, 128)
    H_pad = _round_up(H, 128)

    if tile_h is None:
        per_h = (2 * D_in + 2 * Do_pad) * wdt.itemsize   # weight bytes per hidden unit
        if H_pad * per_h <= weight_budget_bytes:
            tile_h = H_pad                               # fully resident (single-buffered)
        else:                                            # stream: double-buffered tiles
            tile_h = max(128, (weight_budget_bytes // (2 * per_h)) // 128 * 128)
    tile_h = min(_round_up(int(tile_h), 128), H_pad)
    H_pad = _round_up(H_pad, tile_h)
    n_h = H_pad // tile_h

    def padw(w, rows, cols):
        w = jnp.asarray(w, wdt)
        return jnp.pad(w, ((0, rows - w.shape[0]), (0, cols - w.shape[1])))

    def padb(b, cols):
        b = jnp.asarray(b, jnp.float32).reshape(1, -1)
        return jnp.pad(b, ((0, 0), (0, cols - b.shape[1])))

    w1p, w3p = padw(w1, D_in, H_pad), padw(w3, D_in, H_pad)
    b1p, b3p = padb(b1, H_pad), padb(b3, H_pad)
    # Per-tile interleave: cols [t*2th, t*2th+th) = w1 tile t; next th cols = w3 tile t.
    w13 = jnp.concatenate([w1p.reshape(D_in, n_h, tile_h),
                           w3p.reshape(D_in, n_h, tile_h)], axis=2)
    w13 = w13.reshape(D_in, n_h * 2 * tile_h)
    b13 = jnp.concatenate([b1p.reshape(1, n_h, tile_h),
                           b3p.reshape(1, n_h, tile_h)], axis=2)
    b13 = b13.reshape(1, n_h * 2 * tile_h)

    packed = dict(
        w13=w13, b13=b13,
        w2=padw(w2, H_pad, Do_pad), b2=padb(b2, Do_pad),
        w4=padw(w4, H_pad, Do_pad), b4=padb(b4, Do_pad),
    )
    meta = dict(D_in=int(D_in), D_out=int(D_out), H=int(H), H_pad=int(H_pad),
                tile_h=int(tile_h), n_h=int(n_h), Do_pad=int(Do_pad))
    return packed, meta


# --------------------------------------------------------------------------- #
# Forward wrapper
# --------------------------------------------------------------------------- #
def gated_residual_network(x, packed, meta, context=None, *, tile_b=None):
    """relu(x@w1+b1)@w2+b2, gated by sigmoid(relu(x@w3+b3)@w4+b4)."""
    if context is not None:
        x = jnp.concatenate([x, context], axis=1)

    B, D = x.shape
    D_in, D_out = meta["D_in"], meta["D_out"]
    H_pad, tile_h, n_h = meta["H_pad"], meta["tile_h"], meta["n_h"]
    Do_pad = meta["Do_pad"]
    assert D == D_in, f"feature dim {D} != packed input size {D_in}"

    x_item = jnp.dtype(x.dtype).itemsize
    w_item = packed["w13"].dtype.itemsize
    vmem_cap = _device_vmem_bytes()

    # Per-step weight/bias bytes (single-buffered when resident, double when streamed).
    n_wbuf = 1 if n_h == 1 else 2
    w_tile_bytes = n_wbuf * (D_in * 2 * tile_h + 2 * tile_h * Do_pad) * w_item
    bias_bytes = n_wbuf * 2 * tile_h * 4 + 2 * Do_pad * 4

    # ---- batch tiling -------------------------------------------------------
    sub = _sublane(x.dtype)
    if tile_b is None:
        b_aligned = _round_up(B, sub)
        if b_aligned <= 512:
            tile_b = b_aligned            # one grid step; nothing useful to pipeline
        else:
            # Largest MXU-aligned tile whose activation footprint fits remaining VMEM.
            row_bytes = 2 * (D_in + Do_pad) * x_item + 8 * Do_pad + 16 * tile_h
            budget = max(vmem_cap - (8 << 20) - w_tile_bytes - bias_bytes, 8 << 20)
            tile_b = 512 if 512 * row_bytes <= budget else 256
    tile_b = max(sub, _round_up(int(tile_b), sub))
    B_pad = _round_up(B, tile_b)
    n_b = B_pad // tile_b

    # Batch pad only when needed; feature dim of x stays UNPADDED (block dim ==
    # full array dim is legal).  Output / weight lane dims are padded to 128.
    x_p = x if B_pad == B else jnp.pad(x, ((0, B_pad - B), (0, 0)))

    # ---- VMEM limit: actual footprint, capped at real device capacity -------
    n_xbuf = 1 if n_b == 1 else 2
    act_bytes = (n_xbuf * tile_b * D_in * x_item           # x tile(s)
                 + n_xbuf * tile_b * Do_pad * x_item       # output tile(s)
                 + 2 * tile_b * Do_pad * 4                 # f32 accumulators
                 + 2 * tile_b * 2 * tile_h * 4)            # stage-1 slab + relu/cast copy
    vmem_est = w_tile_bytes + bias_bytes + act_bytes
    vmem_limit = int(min(vmem_cap - (8 << 20), max(32 << 20, int(vmem_est * 1.5))))
    vmem_limit = max(vmem_limit, 16 << 20)

    # ---- cost estimate (helps XLA schedule around the custom call) ----------
    flops = 2 * B_pad * (D_in * 2 * H_pad + H_pad * 2 * Do_pad)
    bytes_accessed = (x_p.size * x_item + B_pad * Do_pad * x_item
                      + sum(int(v.size) * v.dtype.itemsize for v in packed.values()))
    cost = pl.CostEstimate(flops=flops, transcendentals=B_pad * Do_pad,
                           bytes_accessed=bytes_accessed)

    two_th = 2 * tile_h
    in_specs = [
        _spec((tile_b, D_in), lambda i, h: (i, 0), single_buffer=(n_b == 1)),   # x
        _spec((D_in, two_th), lambda i, h: (0, h), single_buffer=(n_h == 1)),   # [w1_t|w3_t]
        _spec((1, two_th), lambda i, h: (0, h), single_buffer=(n_h == 1)),      # [b1_t|b3_t]
        _spec((tile_h, Do_pad), lambda i, h: (h, 0), single_buffer=(n_h == 1)), # w2 tile
        _spec((1, Do_pad), lambda i, h: (0, 0), single_buffer=True),            # b2
        _spec((tile_h, Do_pad), lambda i, h: (h, 0), single_buffer=(n_h == 1)), # w4 tile
        _spec((1, Do_pad), lambda i, h: (0, 0), single_buffer=True),            # b4
    ]

    out_p = pl.pallas_call(
        grn_kernel,
        out_shape=jax.ShapeDtypeStruct((B_pad, Do_pad), x.dtype),
        grid_spec=pltpu.PrefetchScalarGridSpec(
            num_scalar_prefetch=0,
            grid=(n_b, n_h),
            in_specs=in_specs,
            out_specs=pl.BlockSpec((tile_b, Do_pad), lambda i, h: (i, 0)),
            scratch_shapes=[pltpu.VMEM((tile_b, Do_pad), jnp.float32),
                            pltpu.VMEM((tile_b, Do_pad), jnp.float32)],
        ),
        compiler_params=pltpu.CompilerParams(
            dimension_semantics=("parallel", "arbitrary"),
            vmem_limit_bytes=vmem_limit),
        cost_estimate=cost,
    )(x_p, packed["w13"], packed["b13"], packed["w2"], packed["b2"],
      packed["w4"], packed["b4"])

    return out_p[:B, :D_out]


# --------------------------------------------------------------------------- #
# Test harness
# --------------------------------------------------------------------------- #
def init_params(key, input_size, hidden_size):
    """PyTorch nn.Linear init: U(-1/sqrt(fan_in), 1/sqrt(fan_in)); weights [in, out]."""
    def linear(k, fan_in, fan_out):
        kw, kb = jax.random.split(k)
        bound = 1.0 / jnp.sqrt(fan_in)
        w = jax.random.uniform(kw, (fan_in, fan_out), jnp.float32, -bound, bound)
        b = jax.random.uniform(kb, (fan_out,), jnp.float32, -bound, bound)
        return w, b
    k1, k2, k3, k4 = jax.random.split(key, 4)
    w1, b1 = linear(k1, input_size, hidden_size)
    w2, b2 = linear(k2, hidden_size, input_size)
    w3, b3 = linear(k3, input_size, hidden_size)
    w4, b4 = linear(k4, hidden_size, input_size)
    return dict(w1=w1, b1=b1, w2=w2, b2=b2, w3=w3, b3=b3, w4=w4, b4=b4)


def grn_reference(x, p, context=None):
    if context is not None:
        x = jnp.concatenate([x, context], axis=1)
    hi = jax.lax.Precision.HIGHEST
    x1 = jnp.dot(jnp.maximum(jnp.dot(x, p["w1"], precision=hi) + p["b1"], 0.0),
                 p["w2"], precision=hi) + p["b2"]
    x2 = jnp.dot(jnp.maximum(jnp.dot(x, p["w3"], precision=hi) + p["b3"], 0.0),
                 p["w4"], precision=hi) + p["b4"]
    return x1 * jax.nn.sigmoid(x2)


if __name__ == "__main__":
    key = jax.random.PRNGKey(0)
    kx, kc, kp, kp2 = jax.random.split(key, 4)

    # --- no-context path -----------------------------------------------------
    batch, input_size, hidden_size = 16, 16, 32
    x = jax.random.normal(kx, (batch, input_size), jnp.float32)
    params = init_params(kp, input_size, hidden_size)
    packed, meta = prepack_grn_params(params)          # one-time prepack

    out = jax.block_until_ready(gated_residual_network(x, packed, meta))
    ref = grn_reference(x, params)
    assert out.shape == (batch, input_size)
    assert jnp.allclose(out, ref, atol=5e-4, rtol=5e-4), "mismatch (no context)"

    # --- context path (features concatenated before fc1/fc3) -----------------
    xd, cd = 10, 6
    params_c = init_params(kp2, xd + cd, hidden_size)
    packed_c, meta_c = prepack_grn_params(params_c)
    xc = jax.random.normal(kx, (batch, xd), jnp.float32)
    cc = jax.random.normal(kc, (batch, cd), jnp.float32)
    out_c = jax.block_until_ready(
        gated_residual_network(xc, packed_c, meta_c, context=cc))
    ref_c = grn_reference(xc, params_c, context=cc)
    assert out_c.shape == (batch, xd + cd)
    assert jnp.allclose(out_c, ref_c, atol=5e-4, rtol=5e-4), "mismatch (context)"

    # TODO(synk): optionally prepack in bf16 (dtype=jnp.bfloat16) for 2x MXU
    # throughput on v6e/v7x once the accuracy tradeoff is validated.
    print("KERNEL_OK")
</pallas_src>

<mosaic_0001>
module attributes {stable_mosaic.version = 11 : i64} {
  func.func @grn_kernel(%arg0: i32, %arg1: i32, %arg2: memref<16x16xf32, #tpu.memory_space<vmem>>, %arg3: memref<16x256xf32, #tpu.memory_space<vmem>>, %arg4: memref<1x256xf32, #tpu.memory_space<vmem>>, %arg5: memref<128x128xf32, #tpu.memory_space<vmem>>, %arg6: memref<1x128xf32, #tpu.memory_space<vmem>>, %arg7: memref<128x128xf32, #tpu.memory_space<vmem>>, %arg8: memref<1x128xf32, #tpu.memory_space<vmem>>, %arg9: memref<16x128xf32, #tpu.memory_space<vmem>>, %arg10: memref<16x128xf32, #tpu.memory_space<vmem>>, %arg11: memref<16x128xf32, #tpu.memory_space<vmem>>) attributes {dimension_semantics = [#tpu.dimension_semantics<parallel>, #tpu.dimension_semantics<arbitrary>], iteration_bounds = array<i64: 1, 1>, scalar_prefetch = 0 : i64, scratch_operands = 2 : i64, tpu.core_type = #tpu.core_type<tc>, window_params = [{pipeline_mode = #tpu.pipeline_mode<synchronous>, transform_indices = @transform_0, window_bounds = array<i64: 16, 16>}, {pipeline_mode = #tpu.pipeline_mode<synchronous>, transform_indices = @transform_1, window_bounds = array<i64: 16, 256>}, {pipeline_mode = #tpu.pipeline_mode<synchronous>, transform_indices = @transform_2, window_bounds = array<i64: 1, 256>}, {pipeline_mode = #tpu.pipeline_mode<synchronous>, transform_indices = @transform_3, window_bounds = array<i64: 128, 128>}, {pipeline_mode = #tpu.pipeline_mode<synchronous>, transform_indices = @transform_4, window_bounds = array<i64: 1, 128>}, {pipeline_mode = #tpu.pipeline_mode<synchronous>, transform_indices = @transform_5, window_bounds = array<i64: 128, 128>}, {pipeline_mode = #tpu.pipeline_mode<synchronous>, transform_indices = @transform_6, window_bounds = array<i64: 1, 128>}, {transform_indices = @transform_7, window_bounds = array<i64: 16, 128>}]} {
    %c0_i32 = arith.constant 0 : i32
    %0 = arith.cmpi eq, %arg1, %c0_i32 : i32
    %1 = arith.extui %0 : i1 to i32
    %c0_i32_0 = arith.constant 0 : i32
    %2 = arith.cmpi ne, %1, %c0_i32_0 : i32
    scf.if %2 {
      %cst_23 = arith.constant 0.000000e+00 : f32
      %26 = vector.broadcast %cst_23 : f32 to vector<16x128xf32>
      %c0_24 = arith.constant 0 : index
      %c0_25 = arith.constant 0 : index
      %27 = vector.load %arg10[%c0_24, %c0_25] : memref<16x128xf32, #tpu.memory_space<vmem>>, vector<16x128xf32>
      tpu.vector_store %arg10[%c0_24, %c0_25], %26 {strides = array<i32>} : memref<16x128xf32, #tpu.memory_space<vmem>>, vector<16x128xf32>,
      %cst_26 = arith.constant 0.000000e+00 : f32
      %28 = vector.broadcast %cst_26 : f32 to vector<16x128xf32>
      %c0_27 = arith.constant 0 : index
      %c0_28 = arith.constant 0 : index
      %29 = vector.load %arg11[%c0_27, %c0_28] : memref<16x128xf32, #tpu.memory_space<vmem>>, vector<16x128xf32>
      tpu.vector_store %arg11[%c0_27, %c0_28], %28 {strides = array<i32>} : memref<16x128xf32, #tpu.memory_space<vmem>>, vector<16x128xf32>,
    } else {
    }
    %c0 = arith.constant 0 : index
    %c0_1 = arith.constant 0 : index
    %3 = vector.load %arg2[%c0, %c0_1] : memref<16x16xf32, #tpu.memory_space<vmem>>, vector<16x16xf32>
    %c0_2 = arith.constant 0 : index
    %c0_3 = arith.constant 0 : index
    %4 = vector.load %arg3[%c0_2, %c0_3] : memref<16x256xf32, #tpu.memory_space<vmem>>, vector<16x256xf32>
    %cst = arith.constant dense<0.000000e+00> : vector<16x256xf32>
    %5 = tpu.matmul %3, %4, %cst {dimension_numbers = #tpu.dot_dimension_numbers<[1], [0], [0], [1], [0, 0, 1, 1], [], []>} : vector<16x16xf32>, vector<16x256xf32>, vector<16x256xf32> -> vector<16x256xf32>
    %c0_4 = arith.constant 0 : index
    %c0_5 = arith.constant 0 : index
    %6 = vector.load %arg4[%c0_4, %c0_5] : memref<1x256xf32, #tpu.memory_space<vmem>>, vector<1x256xf32>
    %7 = vector.broadcast %6 : vector<1x256xf32> to vector<16x256xf32>
    %8 = arith.addf %5, %7 : vector<16x256xf32>
    %cst_6 = arith.constant 0.000000e+00 : f32
    %9 = vector.broadcast %cst_6 : f32 to vector<16x256xf32>
    %10 = arith.maximumf %8, %9 : vector<16x256xf32>
    %c0_7 = arith.constant 0 : index
    %c0_8 = arith.constant 0 : index
    %11 = vector.load %arg10[%c0_7, %c0_8] : memref<16x128xf32, #tpu.memory_space<vmem>>, vector<16x128xf32>
    %12 = vector.extract_strided_slice %10 {offsets = [0, 0], sizes = [16, 128], strides = [1, 1]} : vector<16x256xf32> to vector<16x128xf32>
    %c0_9 = arith.constant 0 : index
    %c0_10 = arith.constant 0 : index
    %13 = vector.load %arg5[%c0_9, %c0_10] : memref<128x128xf32, #tpu.memory_space<vmem>>, vector<128x128xf32>
    %cst_11 = arith.constant dense<0.000000e+00> : vector<16x128xf32>
    %14 = tpu.matmul %12, %13, %cst_11 {dimension_numbers = #tpu.dot_dimension_numbers<[1], [0], [0], [1], [0, 0, 1, 1], [], []>} : vector<16x128xf32>, vector<128x128xf32>, vector<16x128xf32> -> vector<16x128xf32>
    %15 = arith.addf %11, %14 : vector<16x128xf32>
    %c0_12 = arith.constant 0 : index
    %c0_13 = arith.constant 0 : index
    %16 = vector.load %arg10[%c0_12, %c0_13] : memref<16x128xf32, #tpu.memory_space<vmem>>, vector<16x128xf32>
    tpu.vector_store %arg10[%c0_12, %c0_13], %15 {strides = array<i32>} : memref<16x128xf32, #tpu.memory_space<vmem>>, vector<16x128xf32>,
    %c0_14 = arith.constant 0 : index
    %c0_15 = arith.constant 0 : index
    %17 = vector.load %arg11[%c0_14, %c0_15] : memref<16x128xf32, #tpu.memory_space<vmem>>, vector<16x128xf32>
    %18 = vector.extract_strided_slice %10 {offsets = [0, 128], sizes = [16, 128], strides = [1, 1]} : vector<16x256xf32> to vector<16x128xf32>
    %c0_16 = arith.constant 0 : index
    %c0_17 = arith.constant 0 : index
    %19 = vector.load %arg7[%c0_16, %c0_17] : memref<128x128xf32, #tpu.memory_space<vmem>>, vector<128x128xf32>
    %cst_18 = arith.constant dense<0.000000e+00> : vector<16x128xf32>
    %20 = tpu.matmul %18, %19, %cst_18 {dimension_numbers = #tpu.dot_dimension_numbers<[1], [0], [0], [1], [0, 0, 1, 1], [], []>} : vector<16x128xf32>, vector<128x128xf32>, vector<16x128xf32> -> vector<16x128xf32>
    %21 = arith.addf %17, %20 : vector<16x128xf32>
    %c0_19 = arith.constant 0 : index
    %c0_20 = arith.constant 0 : index
    %22 = vector.load %arg11[%c0_19, %c0_20] : memref<16x128xf32, #tpu.memory_space<vmem>>, vector<16x128xf32>
    tpu.vector_store %arg11[%c0_19, %c0_20], %21 {strides = array<i32>} : memref<16x128xf32, #tpu.memory_space<vmem>>, vector<16x128xf32>,
    %c0_i32_21 = arith.constant 0 : i32
    %23 = arith.cmpi eq, %arg1, %c0_i32_21 : i32
    %24 = arith.extui %23 : i1 to i32
    %c0_i32_22 = arith.constant 0 : i32
    %25 = arith.cmpi ne, %24, %c0_i32_22 : i32
    scf.if %25 {
      %c0_23 = arith.constant 0 : index
      %c0_24 = arith.constant 0 : index
      %26 = vector.load %arg10[%c0_23, %c0_24] : memref<16x128xf32, #tpu.memory_space<vmem>>, vector<16x128xf32>
      %c0_25 = arith.constant 0 : index
      %c0_26 = arith.constant 0 : index
      %27 = vector.load %arg6[%c0_25, %c0_26] : memref<1x128xf32, #tpu.memory_space<vmem>>, vector<1x128xf32>
      %28 = vector.broadcast %27 : vector<1x128xf32> to vector<16x128xf32>
      %29 = arith.addf %26, %28 : vector<16x128xf32>
      %c0_27 = arith.constant 0 : index
      %c0_28 = arith.constant 0 : index
      %30 = vector.load %arg11[%c0_27, %c0_28] : memref<16x128xf32, #tpu.memory_space<vmem>>, vector<16x128xf32>
      %c0_29 = arith.constant 0 : index
      %c0_30 = arith.constant 0 : index
      %31 = vector.load %arg8[%c0_29, %c0_30] : memref<1x128xf32, #tpu.memory_space<vmem>>, vector<1x128xf32>
      %32 = vector.broadcast %31 : vector<1x128xf32> to vector<16x128xf32>
      %33 = arith.addf %30, %32 : vector<16x128xf32>
      %cst_31 = arith.constant 5.000000e-01 : f32
      %34 = vector.broadcast %cst_31 : f32 to vector<16x128xf32>
      %35 = arith.mulf %34, %33 : vector<16x128xf32>
      %36 = math.tanh %35 : vector<16x128xf32>
      %cst_32 = arith.constant 5.000000e-01 : f32
      %37 = vector.broadcast %cst_32 : f32 to vector<16x128xf32>
      %38 = arith.mulf %37, %36 : vector<16x128xf32>
      %cst_33 = arith.constant 5.000000e-01 : f32
      %39 = vector.broadcast %cst_33 : f32 to vector<16x128xf32>
      %40 = arith.addf %38, %39 : vector<16x128xf32>
      %41 = arith.mulf %29, %40 : vector<16x128xf32>
      %c0_34 = arith.constant 0 : index
      %c0_35 = arith.constant 0 : index
      %42 = vector.load %arg9[%c0_34, %c0_35] : memref<16x128xf32, #tpu.memory_space<vmem>>, vector<16x128xf32>
      tpu.vector_store %arg9[%c0_34, %c0_35], %41 {strides = array<i32>} : memref<16x128xf32, #tpu.memory_space<vmem>>, vector<16x128xf32>,
    } else {
    }
    return
  }
  func.func @transform_0(%arg0: i32, %arg1: i32) -> (i32, i32) {
    %c0_i32 = arith.constant 0 : i32
    %c0_i32_0 = arith.constant 0 : i32
    return %arg0, %c0_i32 : i32, i32
  }
  func.func @transform_1(%arg0: i32, %arg1: i32) -> (i32, i32) {
    %c0_i32 = arith.constant 0 : i32
    %c0_i32_0 = arith.constant 0 : i32
    return %c0_i32, %arg1 : i32, i32
  }
  func.func @transform_2(%arg0: i32, %arg1: i32) -> (i32, i32) {
    %c0_i32 = arith.constant 0 : i32
    %c0_i32_0 = arith.constant 0 : i32
    return %c0_i32, %arg1 : i32, i32
  }
  func.func @transform_3(%arg0: i32, %arg1: i32) -> (i32, i32) {
    %c0_i32 = arith.constant 0 : i32
    %c0_i32_0 = arith.constant 0 : i32
    return %arg1, %c0_i32 : i32, i32
  }
  func.func @transform_4(%arg0: i32, %arg1: i32) -> (i32, i32) {
    %c0_i32 = arith.constant 0 : i32
    %c0_i32_0 = arith.constant 0 : i32
    %c0_i32_1 = arith.constant 0 : i32
    return %c0_i32, %c0_i32_0 : i32, i32
  }
  func.func @transform_5(%arg0: i32, %arg1: i32) -> (i32, i32) {
    %c0_i32 = arith.constant 0 : i32
    %c0_i32_0 = arith.constant 0 : i32
    return %arg1, %c0_i32 : i32, i32
  }
  func.func @transform_6(%arg0: i32, %arg1: i32) -> (i32, i32) {
    %c0_i32 = arith.constant 0 : i32
    %c0_i32_0 = arith.constant 0 : i32
    %c0_i32_1 = arith.constant 0 : i32
    return %c0_i32, %c0_i32_0 : i32, i32
  }
  func.func @transform_7(%arg0: i32, %arg1: i32) -> (i32, i32) {
    %c0_i32 = arith.constant 0 : i32
    %c0_i32_0 = arith.constant 0 : i32
    return %arg0, %c0_i32 : i32, i32
  }
}

</mosaic_0001>

<llo_original>
// kernel: tpu_custom_call.1
$region0: #{tpu_custom_call.1}
  #allocation0 [shape = 'u32[]', space=smem, size = 0x4, offset = 0x4, fixed_abs, tag = 'smem constant byte address 0x4 - core index']
  #allocation1 [shape = 'u32[144,128]{1,0:T(1,128)}', space=vmem, size = 0x12000, scoped, tag = 'internal scratch']
  #allocation2 [shape = 'f32[16,128]{1,0:T(8,128)}', space=vmem, size = 0x2000, scoped, tag = 'scratch operand']
  #allocation3 [shape = 'f32[16,128]{1,0:T(8,128)}', space=vmem, size = 0x2000, scoped, tag = 'scratch operand']
  %s0 = inlined_call_operand.hbm [shape: f32[16,16], index: 0, kind: input, shape index: {}]
  %s1 = inlined_call_operand.hbm [shape: f32[16,256], index: 1, kind: input, shape index: {}]
  %s2 = inlined_call_operand.vmem [shape: f32[1,256], index: 2, kind: input, shape index: {}]
  %s3 = inlined_call_operand.hbm [shape: f32[128,128], index: 3, kind: input, shape index: {}]
  %s4 = inlined_call_operand.vmem [shape: f32[1,128], index: 4, kind: input, shape index: {}]
  %s5 = inlined_call_operand.hbm [shape: f32[128,128], index: 5, kind: input, shape index: {}]
  %s6 = inlined_call_operand.vmem [shape: f32[1,128], index: 6, kind: input, shape index: {}]
  %s7 = inlined_call_operand.hbm [shape: f32[16,128], index: 7, kind: output, shape index: {}]
  %s8 = sld [smem:[#allocation0]]
  $region62: #{tpu_custom_call.1} parent=0
    _
  %s10 = ssub.s32 1, %s8
  %s11 = scalar_select 0, %s10, %s8
  $region1: #{tpu_custom_call.1} parent=0
    #allocation4 [shape = 'u8[8192]{0}', space=vmem, size = 0x2000, scoped, tag = 'input window, operand 0, single buffered']
    #allocation5 [shape = 's32[1]{0}', space=sflag, size = 0x4, scoped, tag = 'scoped memory for tpu_custom_call.1']
    #allocation6 [shape = 's32[1]{0}', space=sflag, size = 0x4, scoped, tag = 'scoped memory for tpu_custom_call.1']
    #allocation7 [shape = 'u8[16384]{0}', space=vmem, size = 0x4000, scoped, tag = 'input window, operand 1, single buffered']
    #allocation8 [shape = 's32[1]{0}', space=sflag, size = 0x4, scoped, tag = 'scoped memory for tpu_custom_call.1']
    #allocation9 [shape = 'u8[65536]{0}', space=vmem, size = 0x10000, scoped, tag = 'input window, operand 3, single buffered']
    #allocation10 [shape = 'u8[65536]{0}', space=vmem, size = 0x10000, scoped, tag = 'input window, operand 5, single buffered']
    #allocation11 [shape = 's32[1]{0}', space=sflag, size = 0x4, scoped, tag = 'scoped memory for tpu_custom_call.1']
    #allocation12 [shape = 'u8[8192]{0}', space=vmem, size = 0x2000, scoped, tag = 'output window, operand 0, single buffered']
    %12 = vsyncpa [#allocation5], 0
    %13 = vsyncpa [#allocation8], 0
    %14 = vsyncpa [#allocation11], 0
    %15 = vsyncpa [#allocation6], 0
    // Predicated region
    $region2: #{tpu_custom_call.1} parent=1 // pred_check
      _
    $region3: #{tpu_custom_call.1} parent=1 // pred_check_branch
      %17 = sbr.rel (0) target = $region5
    $region4: #{tpu_custom_call.1} parent=1 // pred_region
      %s19 = ssub.s32 256, 256
      %20 = vsyncadd [#allocation5], %s19
      %s21 = sshll.u32 [#allocation4], 4
      %s22 = int_to_ptr.vmem [resolvable:$true] %s21
      %27 = dma.hbm_to_vmem [thread:$0]  %s0, 256, %s22, [#allocation5], 128, 128, 8
    $region5: #{tpu_custom_call.1} parent=1 // pred_fallthru
      _
    // Predicated region
    $region6: #{tpu_custom_call.1} parent=1 // pred_check
      _
    $region7: #{tpu_custom_call.1} parent=1 // pred_check_branch
      %29 = sbr.rel (0) target = $region9
    $region8: #{tpu_custom_call.1} parent=1 // pred_region
      %s31 = ssub.s32 512, 512
      %32 = vsyncadd [#allocation8], %s31
      %s33 = sshll.u32 [#allocation7], 4
      %s34 = int_to_ptr.vmem [resolvable:$true] %s33
      %39 = dma.hbm_to_vmem [thread:$0]  %s1, 512, %s34, [#allocation8], 256, 256, 16
    $region9: #{tpu_custom_call.1} parent=1 // pred_fallthru
      _
    // Predicated region
    $region10: #{tpu_custom_call.1} parent=1 // pred_check
      _
    $region11: #{tpu_custom_call.1} parent=1 // pred_check_branch
      %41 = sbr.rel (0) target = $region13
    $region12: #{tpu_custom_call.1} parent=1 // pred_region
      _
    $region13: #{tpu_custom_call.1} parent=1 // pred_fallthru
      _
    // Predicated region
    $region14: #{tpu_custom_call.1} parent=1 // pred_check
      _
    $region15: #{tpu_custom_call.1} parent=1 // pred_check_branch
      %43 = sbr.rel (0) target = $region17
    $region16: #{tpu_custom_call.1} parent=1 // pred_region
      %s45 = ssub.s32 2048, 2048
      %46 = vsyncadd [#allocation8], %s45
      %s47 = sshll.u32 [#allocation9], 4
      %s48 = int_to_ptr.vmem [resolvable:$true] %s47
      %53 = dma.hbm_to_vmem [thread:$0]  %s3, 2048, %s48, [#allocation8], 128, 128, 8
    $region17: #{tpu_custom_call.1} parent=1 // pred_fallthru
      _
    // Predicated region
    $region18: #{tpu_custom_call.1} parent=1 // pred_check
      _
    $region19: #{tpu_custom_call.1} parent=1 // pred_check_branch
      %55 = sbr.rel (0) target = $region21
    $region20: #{tpu_custom_call.1} parent=1 // pred_region
      _
    $region21: #{tpu_custom_call.1} parent=1 // pred_fallthru
      _
    // Predicated region
    $region22: #{tpu_custom_call.1} parent=1 // pred_check
      _
    $region23: #{tpu_custom_call.1} parent=1 // pred_check_branch
      %57 = sbr.rel (0) target = $region25
    $region24: #{tpu_custom_call.1} parent=1 // pred_region
      %s59 = ssub.s32 2048, 2048
      %60 = vsyncadd [#allocation11], %s59
      %s61 = sshll.u32 [#allocation10], 4
      %s62 = int_to_ptr.vmem [resolvable:$true] %s61
      %67 = dma.hbm_to_vmem [thread:$0]  %s5, 2048, %s62, [#allocation11], 128, 128, 8
    $region25: #{tpu_custom_call.1} parent=1 // pred_fallthru
      _
    // Predicated region
    $region26: #{tpu_custom_call.1} parent=1 // pred_check
      _
    $region27: #{tpu_custom_call.1} parent=1 // pred_check_branch
      %69 = sbr.rel (0) target = $region29
    $region28: #{tpu_custom_call.1} parent=1 // pred_region
      _
    $region29: #{tpu_custom_call.1} parent=1 // pred_fallthru
      _
    // Predicated region
    $region30: #{tpu_custom_call.1} parent=1 // pred_check
      _
    $region31: #{tpu_custom_call.1} parent=1 // pred_check_branch
      %71 = sbr.rel (0) target = $region33
    $region32: #{tpu_custom_call.1} parent=1 // pred_region
      %72 = dma.done [#allocation5], 256
    $region33: #{tpu_custom_call.1} parent=1 // pred_fallthru
      _
    // Predicated region
    $region34: #{tpu_custom_call.1} parent=1 // pred_check
      _
    $region35: #{tpu_custom_call.1} parent=1 // pred_check_branch
      %74 = sbr.rel (0) target = $region37
    $region36: #{tpu_custom_call.1} parent=1 // pred_region
      %75 = dma.done [#allocation8], 512
    $region37: #{tpu_custom_call.1} parent=1 // pred_fallthru
      _
    // Predicated region
    $region38: #{tpu_custom_call.1} parent=1 // pred_check
      _
    $region39: #{tpu_custom_call.1} parent=1 // pred_check_branch
      %77 = sbr.rel (0) target = $region41
    $region40: #{tpu_custom_call.1} parent=1 // pred_region
      %78 = dma.done [#allocation8], 2048
    $region41: #{tpu_custom_call.1} parent=1 // pred_fallthru
      _
    // Predicated region
    $region42: #{tpu_custom_call.1} parent=1 // pred_check
      _
    $region43: #{tpu_custom_call.1} parent=1 // pred_check_branch
      %80 = sbr.rel (0) target = $region45
    $region44: #{tpu_custom_call.1} parent=1 // pred_region
      %81 = dma.done [#allocation11], 2048
    $region45: #{tpu_custom_call.1} parent=1 // pred_fallthru
      _
    %p82 = scmp.eq.s32.totalorder 0, 0
    // Predicated region
    $region46: #{tpu_custom_call.1} parent=1 // pred_check
      %p83 = pneg %p82
    $region47: #{tpu_custom_call.1} parent=1 // pred_check_branch
      %85 = sbr.rel (%p83) target = $region49
    $region48: #{tpu_custom_call.1} parent=1 // pred_region
      %86 = vst [vmem:[#allocation2] sm:$0xff] 0.0
      %87 = vst [vmem:[#allocation2 + $0x8] sm:$0xff] 0.0
      %88 = vst [vmem:[#allocation3] sm:$0xff] 0.0
      %89 = vst [vmem:[#allocation3 + $0x8] sm:$0xff] 0.0
    $region49: #{tpu_custom_call.1} parent=1 // pred_fallthru
      _
    %v90 = vld [vmem:[#allocation4] sm:$0xff]
    %v91 = vld [vmem:[#allocation4 + $0x8] sm:$0xff]
    %v92 = vld [vmem:[#allocation7] sm:$0xff]
    %v93 = vld [vmem:[#allocation7 + $0x8] sm:$0xff]
    %v94 = vld [vmem:[#allocation7 + $0x10] sm:$0xff]
    %v95 = vld [vmem:[#allocation7 + $0x18] sm:$0xff]
    %v96 = vld [vmem:[%s2] sm:$0x3]
    %v98 = vlaneseq
    %v99 = vshrl.u32 %v98, 7
    %v100 = vsub.s32 0, %v99
    %v101 = vrot.slane %v96, %v100
    %v102 = vlaneseq
    %v103 = vshrl.u32 %v102, 7
    %v104 = vsub.s32 1, %v103
    %v105 = vrot.slane %v96, %v104
    %vm108 = vcmask 130048
    %v110 = vsel %vm108, %v90, 0
    %v113 = vsel %vm108, %v91, 0
    %115 = vmatprep.subr.mxu0 %v93
    %116 = vmatpush1.msra.mxu0 %v92
    %117 = vmatprep.subr.mxu0 %v95
    %118 = vmatpush1.msra.mxu0 %v94
    %119 = vmatprep.subr.mxu0 0.0
    %120 = vmatpush1.msra.mxu0 0.0
    %121 = vmatprep.subr.mxu0 0.0
    %122 = vmatpush1.msra.mxu0 0.0
    %123 = vmatprep.subr.mxu0 0.0
    %124 = vmatpush1.msra.mxu0 0.0
    %125 = vmatprep.subr.mxu0 0.0
    %126 = vmatpush1.msra.mxu0 0.0
    %127 = vmatprep.subr.mxu0 0.0
    %128 = vmatpush1.msra.mxu0 0.0
    %129 = vmatprep.subr.mxu0 0.0
    %130 = vmatpush1.msra.mxu0 0.0
    %131 = vmatprep.subr.mxu0 0.0
    %132 = vmatpush1.msra.mxu0 0.0
    %133 = vmatprep.subr.mxu0 0.0
    %134 = vmatpush1.msra.mxu0 0.0
    %135 = vmatprep.subr.mxu0 0.0
    %136 = vmatpush1.msra.mxu0 0.0
    %137 = vmatprep.subr.mxu0 0.0
    %138 = vmatpush1.msra.mxu0 0.0
    %139 = vmatprep.subr.mxu0 0.0
    %140 = vmatpush1.msra.mxu0 0.0
    %141 = vmatprep.subr.mxu0 0.0
    %142 = vmatpush1.msra.mxu0 0.0
    %143 = vmatprep.subr.mxu0 0.0
    %144 = vmatpush1.msra.mxu0 0.0
    %145 = vmatprep.subr.mxu0 0.0
    %146 = vmatpush1.msra.mxu0 0.0
    %147 = vmatprep.subr.mxu0 0.0
    %148 = vmatpush1.msra.mxu0 0.0
    %149 = vmatprep.subr.mxu0 0.0
    %150 = vmatpush1.msra.mxu0 0.0
    %151 = vmatprep.subr.mxu0 0.0
    %152 = vmatpush1.msra.mxu0 0.0
    %153 = vmatprep.subr.mxu0 0.0
    %154 = vmatpush1.msra.mxu0 0.0
    %155 = vmatprep.subr.mxu0 0.0
    %156 = vmatpush1.msra.mxu0 0.0
    %157 = vmatprep.subr.mxu0 0.0
    %158 = vmatpush1.msra.mxu0 0.0
    %159 = vmatprep.subr.mxu0 0.0
    %160 = vmatpush1.msra.mxu0 0.0
    %161 = vmatprep.subr.mxu0 0.0
    %162 = vmatpush1.msra.mxu0 0.0
    %163 = vmatprep.subr.mxu0 0.0
    %164 = vmatpush1.msra.mxu0 0.0
    %165 = vmatprep.subr.mxu0 0.0
    %166 = vmatpush1.msra.mxu0 0.0
    %167 = vmatprep.subr.mxu0 0.0
    %168 = vmatpush1.msra.mxu0 0.0
    %169 = vmatprep.subr.mxu0 0.0
    %170 = vmatpush1.msra.mxu0 0.0
    %171 = vmatprep.subr.mxu0 0.0
    %172 = vmatpush1.msra.mxu0 0.0
    %173 = vmatprep.subr.mxu0 0.0
    %174 = vmatpush1.msra.mxu0 0.0
    %175 = vmatprep.subr.mxu0 0.0
    %176 = vmatpush1.msra.mxu0 0.0
    %177 = vmatprep.subr.mxu0 0.0
    %178 = vmatpush1.msra.mxu0 0.0
    %179 = vmatprep.mubr.f32.mxu0 0.0
    %180 = vmatmul.mubr.f32.gmra.mrb[0].mxu0 %v110
    %v181 = vpop.f32.mrb[0].mxu0
    %v182 = vadd.f32 %v101, %v181
    %v183 = vpop.f32.mrb[0].mxu0
    %v184 = vadd.f32 %v105, %v183
    %185 = vmatprep.mubr.f32.mxu0 0.0
    %186 = vmatmul.mubr.f32.gmra.mrb[0].mxu0 %v113
    %v187 = vpop.f32.mrb[0].mxu0
    %v188 = vadd.f32 %v101, %v187
    %v189 = vpop.f32.mrb[0].mxu0
    %v190 = vadd.f32 %v105, %v189
    %191 = vdwg.mxu0
    %v192 = vmax.f32 %v182, 0.0
    %v193 = vmax.f32 %v184, 0.0
    %v194 = vmax.f32 %v188, 0.0
    %v195 = vmax.f32 %v190, 0.0
    %v196 = vld [vmem:[#allocation2] sm:$0xff]
    %v197 = vld [vmem:[#allocation2 + $0x8] sm:$0xff]
    %v198 = vld [vmem:[#allocation9] sm:$0xff]
    %v199 = vld [vmem:[#allocation9 + $0x8] sm:$0xff]
    %v200 = vld [vmem:[#allocation9 + $0x10] sm:$0xff]
    %v201 = vld [vmem:[#allocation9 + $0x18] sm:$0xff]
    %v202 = vld [vmem:[#allocation9 + $0x20] sm:$0xff]
    %v203 = vld [vmem:[#allocation9 + $0x28] sm:$0xff]
    %v204 = vld [vmem:[#allocation9 + $0x30] sm:$0xff]
    %v205 = vld [vmem:[#allocation9 + $0x38] sm:$0xff]
    %v206 = vld [vmem:[#allocation9 + $0x40] sm:$0xff]
    %v207 = vld [vmem:[#allocation9 + $0x48] sm:$0xff]
    %v208 = vld [vmem:[#allocation9 + $0x50] sm:$0xff]
    %v209 = vld [vmem:[#allocation9 + $0x58] sm:$0xff]
    %v210 = vld [vmem:[#allocation9 + $0x60] sm:$0xff]
    %v211 = vld [vmem:[#allocation9 + $0x68] sm:$0xff]
    %v212 = vld [vmem:[#allocation9 + $0x70] sm:$0xff]
    %v213 = vld [vmem:[#allocation9 + $0x78] sm:$0xff]
    %214 = vmatprep.subr.mxu0 0.0
    %215 = vmatpush1.msra.mxu0 %v198
    %216 = vmatprep.subr.mxu0 0.0
    %217 = vmatpush1.msra.mxu0 %v199
    %218 = vmatprep.subr.mxu0 0.0
    %219 = vmatpush1.msra.mxu0 %v200
    %220 = vmatprep.subr.mxu0 0.0
    %221 = vmatpush1.msra.mxu0 %v201
    %222 = vmatprep.subr.mxu0 0.0
    %223 = vmatpush1.msra.mxu0 %v202
    %224 = vmatprep.subr.mxu0 0.0
    %225 = vmatpush1.msra.mxu0 %v203
    %226 = vmatprep.subr.mxu0 0.0
    %227 = vmatpush1.msra.mxu0 %v204
    %228 = vmatprep.subr.mxu0 0.0
    %229 = vmatpush1.msra.mxu0 %v205
    %230 = vmatprep.subr.mxu0 0.0
    %231 = vmatpush1.msra.mxu0 %v206
    %232 = vmatprep.subr.mxu0 0.0
    %233 = vmatpush1.msra.mxu0 %v207
    %234 = vmatprep.subr.mxu0 0.0
    %235 = vmatpush1.msra.mxu0 %v208
    %236 = vmatprep.subr.mxu0 0.0
    %237 = vmatpush1.msra.mxu0 %v209
    %238 = vmatprep.subr.mxu0 0.0
    %239 = vmatpush1.msra.mxu0 %v210
    %240 = vmatprep.subr.mxu0 0.0
    %241 = vmatpush1.msra.mxu0 %v211
    %242 = vmatprep.subr.mxu0 0.0
    %243 = vmatpush1.msra.mxu0 %v212
    %244 = vmatprep.subr.mxu0 0.0
    %245 = vmatpush1.msra.mxu0 %v213
    %246 = vmatprep.subr.mxu0 0.0
    %247 = vmatpush1.msra.mxu0 0.0
    %248 = vmatprep.subr.mxu0 0.0
    %249 = vmatpush1.msra.mxu0 0.0
    %250 = vmatprep.subr.mxu0 0.0
    %251 = vmatpush1.msra.mxu0 0.0
    %252 = vmatprep.subr.mxu0 0.0
    %253 = vmatpush1.msra.mxu0 0.0
    %254 = vmatprep.subr.mxu0 0.0
    %255 = vmatpush1.msra.mxu0 0.0
    %256 = vmatprep.subr.mxu0 0.0
    %257 = vmatpush1.msra.mxu0 0.0
    %258 = vmatprep.subr.mxu0 0.0
    %259 = vmatpush1.msra.mxu0 0.0
    %260 = vmatprep.subr.mxu0 0.0
    %261 = vmatpush1.msra.mxu0 0.0
    %262 = vmatprep.subr.mxu0 0.0
    %263 = vmatpush1.msra.mxu0 0.0
    %264 = vmatprep.subr.mxu0 0.0
    %265 = vmatpush1.msra.mxu0 0.0
    %266 = vmatprep.subr.mxu0 0.0
    %267 = vmatpush1.msra.mxu0 0.0
    %268 = vmatprep.subr.mxu0 0.0
    %269 = vmatpush1.msra.mxu0 0.0
    %270 = vmatprep.subr.mxu0 0.0
    %271 = vmatpush1.msra.mxu0 0.0
    %272 = vmatprep.subr.mxu0 0.0
    %273 = vmatpush1.msra.mxu0 0.0
    %274 = vmatprep.subr.mxu0 0.0
    %275 = vmatpush1.msra.mxu0 0.0
    %276 = vmatprep.subr.mxu0 0.0
    %277 = vmatpush1.msra.mxu0 0.0
    %278 = vmatprep.mubr.f32.mxu0 0.0
    %279 = vmatmul.mubr.f32.gmra.mrb[0].mxu0 %v192
    %v280 = vpop.f32.mrb[0].mxu0
    %v281 = vadd.f32 0.0, %v280
    %v282 = vpop.f32.mrb[0].mxu0
    %283 = vmatprep.mubr.f32.mxu0 0.0
    %284 = vmatmul.mubr.f32.gmra.mrb[0].mxu0 %v194
    %v285 = vpop.f32.mrb[0].mxu0
    %v286 = vadd.f32 0.0, %v285
    %v287 = vpop.f32.mrb[0].mxu0
    %288 = vdwg.mxu0
    %v289 = vadd.f32 %v196, %v281
    %v290 = vadd.f32 %v197, %v286
    %291 = vst [vmem:[#allocation2] sm:$0xff] %v289
    %292 = vst [vmem:[#allocation2 + $0x8] sm:$0xff] %v290
    %v293 = vld [vmem:[#allocation3] sm:$0xff]
    %v294 = vld [vmem:[#allocation3 + $0x8] sm:$0xff]
    %v295 = vld [vmem:[#allocation10] sm:$0xff]
    %v296 = vld [vmem:[#allocation10 + $0x8] sm:$0xff]
    %v297 = vld [vmem:[#allocation10 + $0x10] sm:$0xff]
    %v298 = vld [vmem:[#allocation10 + $0x18] sm:$0xff]
    %v299 = vld [vmem:[#allocation10 + $0x20] sm:$0xff]
    %v300 = vld [vmem:[#allocation10 + $0x28] sm:$0xff]
    %v301 = vld [vmem:[#allocation10 + $0x30] sm:$0xff]
    %v302 = vld [vmem:[#allocation10 + $0x38] sm:$0xff]
    %v303 = vld [vmem:[#allocation10 + $0x40] sm:$0xff]
    %v304 = vld [vmem:[#allocation10 + $0x48] sm:$0xff]
    %v305 = vld [vmem:[#allocation10 + $0x50] sm:$0xff]
    %v306 = vld [vmem:[#allocation10 + $0x58] sm:$0xff]
    %v307 = vld [vmem:[#allocation10 + $0x60] sm:$0xff]
    %v308 = vld [vmem:[#allocation10 + $0x68] sm:$0xff]
    %v309 = vld [vmem:[#allocation10 + $0x70] sm:$0xff]
    %v310 = vld [vmem:[#allocation10 + $0x78] sm:$0xff]
    %311 = vmatprep.subr.mxu0 0.0
    %312 = vmatpush1.msra.mxu0 %v295
    %313 = vmatprep.subr.mxu0 0.0
    %314 = vmatpush1.msra.mxu0 %v296
    %315 = vmatprep.subr.mxu0 0.0
    %316 = vmatpush1.msra.mxu0 %v297
    %317 = vmatprep.subr.mxu0 0.0
    %318 = vmatpush1.msra.mxu0 %v298
    %319 = vmatprep.subr.mxu0 0.0
    %320 = vmatpush1.msra.mxu0 %v299
    %321 = vmatprep.subr.mxu0 0.0
    %322 = vmatpush1.msra.mxu0 %v300
    %323 = vmatprep.subr.mxu0 0.0
    %324 = vmatpush1.msra.mxu0 %v301
    %325 = vmatprep.subr.mxu0 0.0
    %326 = vmatpush1.msra.mxu0 %v302
    %327 = vmatprep.subr.mxu0 0.0
    %328 = vmatpush1.msra.mxu0 %v303
    %329 = vmatprep.subr.mxu0 0.0
    %330 = vmatpush1.msra.mxu0 %v304
    %331 = vmatprep.subr.mxu0 0.0
    %332 = vmatpush1.msra.mxu0 %v305
    %333 = vmatprep.subr.mxu0 0.0
    %334 = vmatpush1.msra.mxu0 %v306
    %335 = vmatprep.subr.mxu0 0.0
    %336 = vmatpush1.msra.mxu0 %v307
    %337 = vmatprep.subr.mxu0 0.0
    %338 = vmatpush1.msra.mxu0 %v308
    %339 = vmatprep.subr.mxu0 0.0
    %340 = vmatpush1.msra.mxu0 %v309
    %341 = vmatprep.subr.mxu0 0.0
    %342 = vmatpush1.msra.mxu0 %v310
    %343 = vmatprep.subr.mxu0 0.0
    %344 = vmatpush1.msra.mxu0 0.0
    %345 = vmatprep.subr.mxu0 0.0
    %346 = vmatpush1.msra.mxu0 0.0
    %347 = vmatprep.subr.mxu0 0.0
    %348 = vmatpush1.msra.mxu0 0.0
    %349 = vmatprep.subr.mxu0 0.0
    %350 = vmatpush1.msra.mxu0 0.0
    %351 = vmatprep.subr.mxu0 0.0
    %352 = vmatpush1.msra.mxu0 0.0
    %353 = vmatprep.subr.mxu0 0.0
    %354 = vmatpush1.msra.mxu0 0.0
    %355 = vmatprep.subr.mxu0 0.0
    %356 = vmatpush1.msra.mxu0 0.0
    %357 = vmatprep.subr.mxu0 0.0
    %358 = vmatpush1.msra.mxu0 0.0
    %359 = vmatprep.subr.mxu0 0.0
    %360 = vmatpush1.msra.mxu0 0.0
    %361 = vmatprep.subr.mxu0 0.0
    %362 = vmatpush1.msra.mxu0 0.0
    %363 = vmatprep.subr.mxu0 0.0
    %364 = vmatpush1.msra.mxu0 0.0
    %365 = vmatprep.subr.mxu0 0.0
    %366 = vmatpush1.msra.mxu0 0.0
    %367 = vmatprep.subr.mxu0 0.0
    %368 = vmatpush1.msra.mxu0 0.0
    %369 = vmatprep.subr.mxu0 0.0
    %370 = vmatpush1.msra.mxu0 0.0
    %371 = vmatprep.subr.mxu0 0.0
    %372 = vmatpush1.msra.mxu0 0.0
    %373 = vmatprep.subr.mxu0 0.0
    %374 = vmatpush1.msra.mxu0 0.0
    %375 = vmatprep.mubr.f32.mxu0 0.0
    %376 = vmatmul.mubr.f32.gmra.mrb[0].mxu0 %v193
    %v377 = vpop.f32.mrb[0].mxu0
    %v378 = vadd.f32 0.0, %v377
    %v379 = vpop.f32.mrb[0].mxu0
    %380 = vmatprep.mubr.f32.mxu0 0.0
    %381 = vmatmul.mubr.f32.gmra.mrb[0].mxu0 %v195
    %v382 = vpop.f32.mrb[0].mxu0
    %v383 = vadd.f32 0.0, %v382
    %v384 = vpop.f32.mrb[0].mxu0
    %385 = vdwg.mxu0
    %v386 = vadd.f32 %v293, %v378
    %v387 = vadd.f32 %v294, %v383
    %388 = vst [vmem:[#allocation3] sm:$0xff] %v386
    %389 = vst [vmem:[#allocation3 + $0x8] sm:$0xff] %v387
    // Predicated region
    $region50: #{tpu_custom_call.1} parent=1 // pred_check
      %p390 = pneg %p82
    $region51: #{tpu_custom_call.1} parent=1 // pred_check_branch
      %392 = sbr.rel (%p390) target = $region53
    $region52: #{tpu_custom_call.1} parent=1 // pred_region
      %v393 = vld [vmem:[#allocation2] sm:$0xff]
      %v394 = vld [vmem:[#allocation2 + $0x8] sm:$0xff]
      %v395 = vld [vmem:[%s4] sm:$0x1]
      %v397 = vlaneseq
      %v398 = vshrl.u32 %v397, 7
      %v399 = vsub.s32 0, %v398
      %v400 = vrot.slane %v395, %v399
      %v402 = vadd.f32 %v393, %v400
      %v403 = vadd.f32 %v394, %v400
      %v404 = vld [vmem:[#allocation3] sm:$0xff]
      %v405 = vld [vmem:[#allocation3 + $0x8] sm:$0xff]
      %v406 = vld [vmem:[%s6] sm:$0x1]
      %v408 = vlaneseq
      %v409 = vshrl.u32 %v408, 7
      %v410 = vsub.s32 0, %v409
      %v411 = vrot.slane %v406, %v410
      %v413 = vadd.f32 %v404, %v411
      %v414 = vadd.f32 %v405, %v411
      %v415 = vmul.f32 %v413, 0.5
      %v416 = vmul.f32 %v414, 0.5
      %v417 = vtanh.pop %v415
      %v418 = vtanh.pop %v416
      %v419 = vmul.f32 %v417, 0.5
      %v420 = vmul.f32 %v418, 0.5
      %v421 = vadd.f32 %v419, 0.5
      %v422 = vadd.f32 %v420, 0.5
      %v423 = vmul.f32 %v402, %v421
      %v424 = vmul.f32 %v403, %v422
      %425 = vst [vmem:[#allocation12] sm:$0xff] %v423
      %426 = vst [vmem:[#allocation12 + $0x8] sm:$0xff] %v424
    $region53: #{tpu_custom_call.1} parent=1 // pred_fallthru
      _
    // Predicated region
    $region54: #{tpu_custom_call.1} parent=1 // pred_check
      _
    $region55: #{tpu_custom_call.1} parent=1 // pred_check_branch
      %428 = sbr.rel (0) target = $region57
    $region56: #{tpu_custom_call.1} parent=1 // pred_region
      %s430 = ssub.s32 256, 256
      %431 = vsyncadd [#allocation6], %s430
      %s432 = sshll.u32 [#allocation12], 4
      %s433 = int_to_ptr.vmem [resolvable:$true] %s432
      %438 = dma.vmem_to_hbm [thread:$0]  %s433, 256, %s7, [#allocation6], 128, 128, 8
    $region57: #{tpu_custom_call.1} parent=1 // pred_fallthru
      _
    // Predicated region
    $region58: #{tpu_custom_call.1} parent=1 // pred_check
      _
    $region59: #{tpu_custom_call.1} parent=1 // pred_check_branch
      %440 = sbr.rel (0) target = $region61
    $region60: #{tpu_custom_call.1} parent=1 // pred_region
      %441 = dma.done [#allocation6], 256
    $region61: #{tpu_custom_call.1} parent=1 // pred_fallthru
      _
    %442 = vsyncpa [#allocation5], 1
    %443 = vsyncpa [#allocation8], 1
    %444 = vsyncpa [#allocation11], 1
    %445 = vsyncpa [#allocation6], 1

</llo_original>
